<compile_context>
chip_gen: v7x
topology: tpu7x:2x2x1
jax: 0.10.0
libtpu: 0.0.40
codegen_flags: <defaults>
</compile_context>

<pallas_src>
import jax
import jax.numpy as jnp
from jax import lax
from jax.experimental import pallas as pl
from jax.experimental.pallas import tpu as pltpu

LN_EPS = 1e-5


def _rtgln_kernel(x_ref, xres_ref, gate_ref, w_ref, b_ref, o_ref):
    # LayerNorm over the last (lane) dim; statistics in f32 for torch parity.
    xr = xres_ref[...].astype(jnp.float32)
    mean = jnp.mean(xr, axis=-1, keepdims=True)
    centered = xr - mean
    var = jnp.mean(centered * centered, axis=-1, keepdims=True)
    normed = centered * lax.rsqrt(var + LN_EPS)
    normed = normed * w_ref[...].astype(jnp.float32) + b_ref[...].astype(jnp.float32)

    # tanh in the gate's native dtype (bf16 EUP path on v6e/v7x when inputs are bf16;
    # exact f32 when inputs are f32), then upcast for the fused residual add.
    tanh_gate = jnp.tanh(1.0 - gate_ref[...]).astype(jnp.float32)

    out = x_ref[...].astype(jnp.float32) + normed * tanh_gate
    o_ref[...] = out.astype(o_ref.dtype)


def _vmem_capacity_bytes():
    try:
        info = pltpu.get_tpu_info()
        return int(getattr(info, "vmem_capacity_bytes", 64 * 1024 * 1024))
    except Exception:
        return 64 * 1024 * 1024  # assume the smallest (v7x per-TC) if query fails


def _pick_row_tile(rows, D, itemsize, vmem_cap):
    """Largest row tile fitting a safe double-buffered VMEM budget, sublane-aligned."""
    # sublane packing: f32 -> 8 rows, bf16 -> 16, int8/fp8 -> 32
    pack = {4: 8, 2: 16, 1: 32}.get(itemsize, 8)
    if rows <= pack:
        return rows, pack  # block equals full array extent

    # Budget: 4 row-tiled streams (x, x_res, gate, out) x 2 pipeline buffers, leaving
    # generous headroom for weight/bias and compiler scratch on every generation.
    budget = min(vmem_cap // 2, 48 * 1024 * 1024)
    bytes_per_row = 4 * 2 * D * itemsize
    t = max(pack, budget // max(bytes_per_row, 1))
    t = min(t, 1024)                         # diminishing returns beyond ~1k rows
    t = min(t, (rows // pack) * pack)        # never exceed the array extent
    t = max(pack, (t // pack) * pack)        # keep blocks (pack, 128)-aligned
    return int(t), pack


def residual_tanh_gated_layernorm(x, x_res, gate, weight, bias, *, row_tile=None):
    """x, x_res, gate: [B, S, D]; weight, bias: [D]."""
    B, S, D = x.shape
    rows = B * S
    itemsize = jnp.dtype(x.dtype).itemsize
    vmem_cap = _vmem_capacity_bytes()

    auto_tile, _ = _pick_row_tile(rows, D, itemsize, vmem_cap)
    if row_tile is None:
        row_tile = auto_tile

    x2 = x.reshape(rows, D)
    xr2 = x_res.reshape(rows, D)
    g2 = gate.reshape(rows, D)
    w2 = weight.reshape(1, D)
    b2 = bias.reshape(1, D)

    grid = (pl.cdiv(rows, row_tile),)  # partial last block handled by Pallas (OOB writes dropped)
    row_spec = pl.BlockSpec((row_tile, D), lambda i: (i, 0))
    par_spec = pl.BlockSpec((1, D), lambda i: (0, 0))  # weight/bias stay resident across grid

    # Explicit VMEM limit: 4 double-buffered row streams + params + slack, per generation.
    needed = 4 * 2 * row_tile * D * itemsize + 4 * D * jnp.dtype(weight.dtype).itemsize
    vmem_limit = int(min(max(needed + (4 << 20), 16 << 20), vmem_cap - (4 << 20)))

    out = pl.pallas_call(
        _rtgln_kernel,
        out_shape=jax.ShapeDtypeStruct((rows, D), x.dtype),
        grid_spec=pl.GridSpec(
            grid=grid,
            in_specs=[row_spec, row_spec, row_spec, par_spec, par_spec],
            out_specs=row_spec,
        ),
        compiler_params=pltpu.CompilerParams(
            dimension_semantics=("parallel",),
            vmem_limit_bytes=vmem_limit,
        ),
    )(x2, xr2, g2, w2, b2)
    return out.reshape(B, S, D)


def _reference(x, x_res, gate, weight, bias):
    xr = x_res.astype(jnp.float32)
    mean = jnp.mean(xr, axis=-1, keepdims=True)
    var = jnp.mean((xr - mean) ** 2, axis=-1, keepdims=True)
    normed = (xr - mean) / jnp.sqrt(var + LN_EPS)
    normed = normed * weight.astype(jnp.float32) + bias.astype(jnp.float32)
    out = x.astype(jnp.float32) + normed * jnp.tanh(1.0 - gate.astype(jnp.float32))
    return out.astype(x.dtype)


if __name__ == "__main__":
    # Small but representative: lane-dense feature dim (multiple of 128).
    B, S, D = 2, 8, 128
    key = jax.random.PRNGKey(0)
    k1, k2, k3 = jax.random.split(key, 3)

    x = jax.random.normal(k1, (B, S, D), dtype=jnp.float32)
    x_res = jax.random.normal(k2, (B, S, D), dtype=jnp.float32)
    gate = jax.random.normal(k3, (B, S, D), dtype=jnp.float32)

    # nn.LayerNorm(dim) default init: weight = ones, bias = zeros
    weight = jnp.ones((D,), dtype=jnp.float32)
    bias = jnp.zeros((D,), dtype=jnp.float32)

    out = residual_tanh_gated_layernorm(x, x_res, gate, weight, bias)
    out = jax.block_until_ready(out)

    ref = _reference(x, x_res, gate, weight, bias)
    assert out.shape == x.shape
    assert jnp.allclose(out, ref, atol=1e-5, rtol=1e-5), "mismatch vs reference"

    print("KERNEL_OK")
</pallas_src>

<mosaic_0001>
module attributes {stable_mosaic.version = 11 : i64} {
  func.func @_rtgln_kernel(%arg0: i32, %arg1: memref<16x128xf32, #tpu.memory_space<vmem>>, %arg2: memref<16x128xf32, #tpu.memory_space<vmem>>, %arg3: memref<16x128xf32, #tpu.memory_space<vmem>>, %arg4: memref<1x128xf32, #tpu.memory_space<vmem>>, %arg5: memref<1x128xf32, #tpu.memory_space<vmem>>, %arg6: memref<16x128xf32, #tpu.memory_space<vmem>>) attributes {dimension_semantics = [#tpu.dimension_semantics<parallel>], iteration_bounds = array<i64: 1>, scalar_prefetch = 0 : i64, scratch_operands = 0 : i64, tpu.core_type = #tpu.core_type<tc>, window_params = [{transform_indices = @transform_0, window_bounds = array<i64: 16, 128>}, {transform_indices = @transform_1, window_bounds = array<i64: 16, 128>}, {transform_indices = @transform_2, window_bounds = array<i64: 16, 128>}, {pipeline_mode = #tpu.pipeline_mode<synchronous>, transform_indices = @transform_3, window_bounds = array<i64: 1, 128>}, {pipeline_mode = #tpu.pipeline_mode<synchronous>, transform_indices = @transform_4, window_bounds = array<i64: 1, 128>}, {transform_indices = @transform_5, window_bounds = array<i64: 16, 128>}]} {
    %c0 = arith.constant 0 : index
    %c0_0 = arith.constant 0 : index
    %0 = vector.load %arg2[%c0, %c0_0] : memref<16x128xf32, #tpu.memory_space<vmem>>, vector<16x128xf32>
    %cst = arith.constant dense<0.000000e+00> : vector<16xf32>
    %1 = vector.multi_reduction <add>, %0, %cst [1] : vector<16x128xf32> to vector<16xf32>
    %2 = vector.shape_cast %1 : vector<16xf32> to vector<16x1xf32>
    %cst_1 = arith.constant 1.280000e+02 : f32
    %3 = vector.broadcast %cst_1 : f32 to vector<16x1xf32>
    %4 = arith.divf %2, %3 : vector<16x1xf32>
    %5 = vector.broadcast %4 : vector<16x1xf32> to vector<16x128xf32>
    %6 = arith.subf %0, %5 : vector<16x128xf32>
    %7 = arith.mulf %6, %6 : vector<16x128xf32>
    %cst_2 = arith.constant dense<0.000000e+00> : vector<16xf32>
    %8 = vector.multi_reduction <add>, %7, %cst_2 [1] : vector<16x128xf32> to vector<16xf32>
    %9 = vector.shape_cast %8 : vector<16xf32> to vector<16x1xf32>
    %cst_3 = arith.constant 1.280000e+02 : f32
    %10 = vector.broadcast %cst_3 : f32 to vector<16x1xf32>
    %11 = arith.divf %9, %10 : vector<16x1xf32>
    %cst_4 = arith.constant 9.99999974E-6 : f32
    %12 = vector.broadcast %cst_4 : f32 to vector<16x1xf32>
    %13 = arith.addf %11, %12 : vector<16x1xf32>
    %14 = math.rsqrt %13 : vector<16x1xf32>
    %15 = vector.broadcast %14 : vector<16x1xf32> to vector<16x128xf32>
    %16 = arith.mulf %6, %15 : vector<16x128xf32>
    %c0_5 = arith.constant 0 : index
    %c0_6 = arith.constant 0 : index
    %17 = vector.load %arg4[%c0_5, %c0_6] : memref<1x128xf32, #tpu.memory_space<vmem>>, vector<1x128xf32>
    %18 = vector.broadcast %17 : vector<1x128xf32> to vector<16x128xf32>
    %19 = arith.mulf %16, %18 : vector<16x128xf32>
    %c0_7 = arith.constant 0 : index
    %c0_8 = arith.constant 0 : index
    %20 = vector.load %arg5[%c0_7, %c0_8] : memref<1x128xf32, #tpu.memory_space<vmem>>, vector<1x128xf32>
    %21 = vector.broadcast %20 : vector<1x128xf32> to vector<16x128xf32>
    %22 = arith.addf %19, %21 : vector<16x128xf32>
    %c0_9 = arith.constant 0 : index
    %c0_10 = arith.constant 0 : index
    %23 = vector.load %arg3[%c0_9, %c0_10] : memref<16x128xf32, #tpu.memory_space<vmem>>, vector<16x128xf32>
    %cst_11 = arith.constant 1.000000e+00 : f32
    %24 = vector.broadcast %cst_11 : f32 to vector<16x128xf32>
    %25 = arith.subf %24, %23 : vector<16x128xf32>
    %26 = math.tanh %25 : vector<16x128xf32>
    %c0_12 = arith.constant 0 : index
    %c0_13 = arith.constant 0 : index
    %27 = vector.load %arg1[%c0_12, %c0_13] : memref<16x128xf32, #tpu.memory_space<vmem>>, vector<16x128xf32>
    %28 = arith.mulf %22, %26 : vector<16x128xf32>
    %29 = arith.addf %27, %28 : vector<16x128xf32>
    %c0_14 = arith.constant 0 : index
    %c0_15 = arith.constant 0 : index
    %30 = vector.load %arg6[%c0_14, %c0_15] : memref<16x128xf32, #tpu.memory_space<vmem>>, vector<16x128xf32>
    tpu.vector_store %arg6[%c0_14, %c0_15], %29 {strides = array<i32>} : memref<16x128xf32, #tpu.memory_space<vmem>>, vector<16x128xf32>,
    return
  }
  func.func @transform_0(%arg0: i32) -> (i32, i32) {
    %c0_i32 = arith.constant 0 : i32
    %c0_i32_0 = arith.constant 0 : i32
    return %arg0, %c0_i32 : i32, i32
  }
  func.func @transform_1(%arg0: i32) -> (i32, i32) {
    %c0_i32 = arith.constant 0 : i32
    %c0_i32_0 = arith.constant 0 : i32
    return %arg0, %c0_i32 : i32, i32
  }
  func.func @transform_2(%arg0: i32) -> (i32, i32) {
    %c0_i32 = arith.constant 0 : i32
    %c0_i32_0 = arith.constant 0 : i32
    return %arg0, %c0_i32 : i32, i32
  }
  func.func @transform_3(%arg0: i32) -> (i32, i32) {
    %c0_i32 = arith.constant 0 : i32
    %c0_i32_0 = arith.constant 0 : i32
    %c0_i32_1 = arith.constant 0 : i32
    return %c0_i32, %c0_i32_0 : i32, i32
  }
  func.func @transform_4(%arg0: i32) -> (i32, i32) {
    %c0_i32 = arith.constant 0 : i32
    %c0_i32_0 = arith.constant 0 : i32
    %c0_i32_1 = arith.constant 0 : i32
    return %c0_i32, %c0_i32_0 : i32, i32
  }
  func.func @transform_5(%arg0: i32) -> (i32, i32) {
    %c0_i32 = arith.constant 0 : i32
    %c0_i32_0 = arith.constant 0 : i32
    return %arg0, %c0_i32 : i32, i32
  }
}

</mosaic_0001>

<llo_original>
// kernel: tpu_custom_call.1
$region0: #{tpu_custom_call.1}
  #allocation0 [shape = 'u32[]', space=smem, size = 0x4, offset = 0x4, fixed_abs, tag = 'smem constant byte address 0x4 - core index']
  #allocation1 [shape = 'u32[144,128]{1,0:T(1,128)}', space=vmem, size = 0x12000, scoped, tag = 'internal scratch']
  %s0 = inlined_call_operand.hbm [shape: f32[16,128], index: 0, kind: input, shape index: {}]
  %s1 = inlined_call_operand.hbm [shape: f32[16,128], index: 1, kind: input, shape index: {}]
  %s2 = inlined_call_operand.hbm [shape: f32[16,128], index: 2, kind: input, shape index: {}]
  %s3 = inlined_call_operand.vmem [shape: f32[1,128], index: 3, kind: input, shape index: {}]
  %s4 = inlined_call_operand.vmem [shape: f32[1,128], index: 4, kind: input, shape index: {}]
  %s5 = inlined_call_operand.hbm [shape: f32[16,128], index: 5, kind: output, shape index: {}]
  %s6 = sld [smem:[#allocation0]]
  $region42: #{tpu_custom_call.1} parent=0
    _
  %s8 = ssub.s32 1, %s6
  %s9 = scalar_select 0, %s8, %s6
  $region1: #{tpu_custom_call.1} parent=0
    #allocation2 [shape = 'u8[8192]{0}', space=vmem, size = 0x2000, scoped, tag = 'input window, operand 0, single buffered']
    #allocation3 [shape = 's32[1]{0}', space=sflag, size = 0x4, scoped, tag = 'scoped memory for tpu_custom_call.1']
    #allocation4 [shape = 's32[1]{0}', space=sflag, size = 0x4, scoped, tag = 'scoped memory for tpu_custom_call.1']
    #allocation5 [shape = 'u8[8192]{0}', space=vmem, size = 0x2000, scoped, tag = 'input window, operand 1, single buffered']
    #allocation6 [shape = 's32[1]{0}', space=sflag, size = 0x4, scoped, tag = 'scoped memory for tpu_custom_call.1']
    #allocation7 [shape = 'u8[8192]{0}', space=vmem, size = 0x2000, scoped, tag = 'input window, operand 2, single buffered']
    #allocation8 [shape = 'u8[8192]{0}', space=vmem, size = 0x2000, scoped, tag = 'output window, operand 0, single buffered']
    %10 = vsyncpa [#allocation3], 0
    %11 = vsyncpa [#allocation6], 0
    %12 = vsyncpa [#allocation4], 0
    // Predicated region
    $region2: #{tpu_custom_call.1} parent=1 // pred_check
      _
    $region3: #{tpu_custom_call.1} parent=1 // pred_check_branch
      %14 = sbr.rel (0) target = $region5
    $region4: #{tpu_custom_call.1} parent=1 // pred_region
      %s16 = ssub.s32 256, 256
      %17 = vsyncadd [#allocation3], %s16
      %s18 = sshll.u32 [#allocation2], 4
      %s19 = int_to_ptr.vmem [resolvable:$true] %s18
      %24 = dma.hbm_to_vmem [thread:$0]  %s0, 256, %s19, [#allocation3], 128, 128, 8
    $region5: #{tpu_custom_call.1} parent=1 // pred_fallthru
      _
    // Predicated region
    $region6: #{tpu_custom_call.1} parent=1 // pred_check
      _
    $region7: #{tpu_custom_call.1} parent=1 // pred_check_branch
      %26 = sbr.rel (0) target = $region9
    $region8: #{tpu_custom_call.1} parent=1 // pred_region
      %s28 = ssub.s32 256, 256
      %29 = vsyncadd [#allocation6], %s28
      %s30 = sshll.u32 [#allocation5], 4
      %s31 = int_to_ptr.vmem [resolvable:$true] %s30
      %36 = dma.hbm_to_vmem [thread:$0]  %s1, 256, %s31, [#allocation6], 128, 128, 8
    $region9: #{tpu_custom_call.1} parent=1 // pred_fallthru
      _
    // Predicated region
    $region10: #{tpu_custom_call.1} parent=1 // pred_check
      _
    $region11: #{tpu_custom_call.1} parent=1 // pred_check_branch
      %38 = sbr.rel (0) target = $region13
    $region12: #{tpu_custom_call.1} parent=1 // pred_region
      %s40 = ssub.s32 256, 256
      %41 = vsyncadd [#allocation6], %s40
      %s42 = sshll.u32 [#allocation7], 4
      %s43 = int_to_ptr.vmem [resolvable:$true] %s42
      %48 = dma.hbm_to_vmem [thread:$0]  %s2, 256, %s43, [#allocation6], 128, 128, 8
    $region13: #{tpu_custom_call.1} parent=1 // pred_fallthru
      _
    // Predicated region
    $region14: #{tpu_custom_call.1} parent=1 // pred_check
      _
    $region15: #{tpu_custom_call.1} parent=1 // pred_check_branch
      %50 = sbr.rel (0) target = $region17
    $region16: #{tpu_custom_call.1} parent=1 // pred_region
      _
    $region17: #{tpu_custom_call.1} parent=1 // pred_fallthru
      _
    // Predicated region
    $region18: #{tpu_custom_call.1} parent=1 // pred_check
      _
    $region19: #{tpu_custom_call.1} parent=1 // pred_check_branch
      %52 = sbr.rel (0) target = $region21
    $region20: #{tpu_custom_call.1} parent=1 // pred_region
      _
    $region21: #{tpu_custom_call.1} parent=1 // pred_fallthru
      _
    // Predicated region
    $region22: #{tpu_custom_call.1} parent=1 // pred_check
      _
    $region23: #{tpu_custom_call.1} parent=1 // pred_check_branch
      %54 = sbr.rel (0) target = $region25
    $region24: #{tpu_custom_call.1} parent=1 // pred_region
      %55 = dma.done [#allocation3], 256
    $region25: #{tpu_custom_call.1} parent=1 // pred_fallthru
      _
    // Predicated region
    $region26: #{tpu_custom_call.1} parent=1 // pred_check
      _
    $region27: #{tpu_custom_call.1} parent=1 // pred_check_branch
      %57 = sbr.rel (0) target = $region29
    $region28: #{tpu_custom_call.1} parent=1 // pred_region
      %58 = dma.done [#allocation6], 256
    $region29: #{tpu_custom_call.1} parent=1 // pred_fallthru
      _
    // Predicated region
    $region30: #{tpu_custom_call.1} parent=1 // pred_check
      _
    $region31: #{tpu_custom_call.1} parent=1 // pred_check_branch
      %60 = sbr.rel (0) target = $region33
    $region32: #{tpu_custom_call.1} parent=1 // pred_region
      %61 = dma.done [#allocation6], 256
    $region33: #{tpu_custom_call.1} parent=1 // pred_fallthru
      _
    %v62 = vld [vmem:[#allocation5] sm:$0xff]
    %v63 = vld [vmem:[#allocation5 + $0x8] sm:$0xff]
    %64 = vadd.xlane.f32.xlu0 %v62
    %v65 = vpop.xlane.xlu0 %64
    %66 = vadd.xlane.f32.xlu0 %v63
    %v67 = vpop.xlane.xlu0 %66
    %v68 = vrcp.pop 128.0
    %v69 = vmul.f32 %v65, %v68
    %v70 = vmul.f32 %v67, %v68
    %v71 = vsub.f32 %v62, %v69
    %v72 = vsub.f32 %v63, %v70
    %v73 = vmul.f32 %v71, %v71
    %v74 = vmul.f32 %v72, %v72
    %75 = vadd.xlane.f32.xlu0 %v73
    %v76 = vpop.xlane.xlu0 %75
    %77 = vadd.xlane.f32.xlu0 %v74
    %v78 = vpop.xlane.xlu0 %77
    %v79 = vmul.f32 %v76, %v68
    %v80 = vmul.f32 %v78, %v68
    %v81 = vadd.f32 %v79, 1e-05
    %v82 = vadd.f32 %v80, 1e-05
    %v83 = vrsqrt.pop %v81
    %v84 = vrsqrt.pop %v82
    %v85 = vmul.f32 %v71, %v83
    %v86 = vmul.f32 %v72, %v84
    %v87 = vld [vmem:[%s3] sm:$0x1]
    %v89 = vlaneseq
    %v90 = vshrl.u32 %v89, 7
    %v91 = vsub.s32 0, %v90
    %v92 = vrot.slane %v87, %v91
    %v94 = vmul.f32 %v85, %v92
    %v95 = vmul.f32 %v86, %v92
    %v96 = vld [vmem:[%s4] sm:$0x1]
    %v98 = vlaneseq
    %v99 = vshrl.u32 %v98, 7
    %v100 = vsub.s32 0, %v99
    %v101 = vrot.slane %v96, %v100
    %v103 = vadd.f32 %v94, %v101
    %v104 = vadd.f32 %v95, %v101
    %v105 = vld [vmem:[#allocation7] sm:$0xff]
    %v106 = vld [vmem:[#allocation7 + $0x8] sm:$0xff]
    %v107 = vsub.f32 1.0, %v105
    %v108 = vsub.f32 1.0, %v106
    %v109 = vtanh.pop %v107
    %v110 = vtanh.pop %v108
    %v111 = vld [vmem:[#allocation2] sm:$0xff]
    %v112 = vld [vmem:[#allocation2 + $0x8] sm:$0xff]
    %v113 = vmul.f32 %v103, %v109
    %v114 = vmul.f32 %v104, %v110
    %v115 = vadd.f32 %v111, %v113
    %v116 = vadd.f32 %v112, %v114
    %117 = vst [vmem:[#allocation8] sm:$0xff] %v115
    %118 = vst [vmem:[#allocation8 + $0x8] sm:$0xff] %v116
    // Predicated region
    $region34: #{tpu_custom_call.1} parent=1 // pred_check
      _
    $region35: #{tpu_custom_call.1} parent=1 // pred_check_branch
      %120 = sbr.rel (0) target = $region37
    $region36: #{tpu_custom_call.1} parent=1 // pred_region
      %s122 = ssub.s32 256, 256
      %123 = vsyncadd [#allocation4], %s122
      %s124 = sshll.u32 [#allocation8], 4
      %s125 = int_to_ptr.vmem [resolvable:$true] %s124
      %130 = dma.vmem_to_hbm [thread:$0]  %s125, 256, %s5, [#allocation4], 128, 128, 8
    $region37: #{tpu_custom_call.1} parent=1 // pred_fallthru
      _
    // Predicated region
    $region38: #{tpu_custom_call.1} parent=1 // pred_check
      _
    $region39: #{tpu_custom_call.1} parent=1 // pred_check_branch
      %132 = sbr.rel (0) target = $region41
    $region40: #{tpu_custom_call.1} parent=1 // pred_region
      %133 = dma.done [#allocation4], 256
    $region41: #{tpu_custom_call.1} parent=1 // pred_fallthru
      _
    %134 = vsyncpa [#allocation3], 1
    %135 = vsyncpa [#allocation6], 1
    %136 = vsyncpa [#allocation4], 1

</llo_original>
